<compile_context>
chip_gen: v7x
topology: tpu7x:2x2x1
jax: 0.10.0
libtpu: 0.0.40
codegen_flags: <defaults>
</compile_context>

<pallas_src>
import jax
import jax.numpy as jnp
from jax import lax
from jax.experimental import pallas as pl
from jax.experimental.pallas import tpu as pltpu

OUT_FEATURES = 768


def _round_up(x, m):
    return (x + m - 1) // m * m


def _linear_kernel(x_ref, w_ref, b_ref, o_ref):
    # x_ref: (tm, K) bf16   w_ref: (N, K) bf16   b_ref: (1, N) f32   o_ref: (tm, N) f32
    acc = lax.dot_general(
        x_ref[...], w_ref[...],
        dimension_numbers=(((1,), (1,)), ((), ())),  # contract on K; MXU handles W^T
        preferred_element_type=jnp.float32,
    )
    o_ref[...] = (acc + b_ref[...]).astype(o_ref.dtype)


def linear_pallas(x2d, w, b, *, tm_cap=512, compute_dtype=jnp.bfloat16):
    """y = x2d @ w.T + b.

    x2d: (M, K) f32, w: (N, K) f32 (PyTorch layout, NOT pre-transposed), b: (N,) f32.
    Returns (M, N) f32.
    """
    M, K = x2d.shape
    N, K2 = w.shape
    assert K == K2 and b.shape == (N,)

    # M tiling: multiple of 8 (sublane), capped so blocks stay small on v7x (64 MiB VMEM).
    tm = min(_round_up(max(M, 1), 8), tm_cap)
    m_pad = _round_up(M, tm)
    if m_pad != M:
        x2d = jnp.pad(x2d, ((0, m_pad - M), (0, 0)))

    # Feed MXU in bf16 (f32 accumulation inside the kernel); bias stays f32 on the VPU.
    # TODO(synk): in a real model, store weights in bf16 once at init instead of casting per call.
    x_c = x2d.astype(compute_dtype)
    w_c = w.astype(compute_dtype)
    b2d = b.reshape(1, N)

    grid = (m_pad // tm,)  # single N step: N=768 weight slab is only ~48 KB in bf16

    cost = pl.CostEstimate(
        flops=2 * m_pad * K * N,
        transcendentals=0,
        bytes_accessed=(x_c.size * x_c.dtype.itemsize
                        + w_c.size * w_c.dtype.itemsize
                        + b2d.size * 4
                        + m_pad * N * 4),
    )

    out = pl.pallas_call(
        _linear_kernel,
        out_shape=jax.ShapeDtypeStruct((m_pad, N), jnp.float32),
        grid_spec=pltpu.PrefetchScalarGridSpec(
            num_scalar_prefetch=0,
            grid=grid,
            in_specs=[
                pl.BlockSpec((tm, K), lambda i: (i, 0)),   # activations, tiled over M
                pl.BlockSpec((N, K), lambda i: (0, 0)),    # full weight, resident across M steps
                pl.BlockSpec((1, N), lambda i: (0, 0)),    # bias, resident
            ],
            out_specs=pl.BlockSpec((tm, N), lambda i: (i, 0)),  # lane-dense (mult. of 128) stores
        ),
        compiler_params=pltpu.CompilerParams(
            dimension_semantics=("parallel",),
        ),
        cost_estimate=cost,
    )(x_c, w_c, b2d)

    if m_pad != M:
        out = out[:M]
    return out


def net_forward(x, w, b):
    """Equivalent of Net.forward. x: (..., K), w: (768, K), b: (768,)."""
    lead_shape = x.shape[:-1]
    K = x.shape[-1]
    x2d = x.reshape(-1, K)
    y2d = linear_pallas(x2d, w, b)  # w passed untransposed; kernel contracts on K
    return y2d.reshape(*lead_shape, OUT_FEATURES)


if __name__ == "__main__":
    # Small shapes consistent with the module: batch=2, seq=8, embed=32.
    NMT_embed_size = 32
    key = jax.random.PRNGKey(0)
    kx, kw, kb = jax.random.split(key, 3)

    # PyTorch-Linear-style uniform init with bound 1/sqrt(fan_in).
    bound = 1.0 / jnp.sqrt(jnp.float32(NMT_embed_size))
    w = jax.random.uniform(kw, (OUT_FEATURES, NMT_embed_size), jnp.float32,
                           minval=-bound, maxval=bound)
    b = jax.random.uniform(kb, (OUT_FEATURES,), jnp.float32,
                           minval=-bound, maxval=bound)
    x = jax.random.normal(kx, (2, 8, NMT_embed_size), jnp.float32)

    y = net_forward(x, w, b)
    jax.block_until_ready(y)
    assert y.shape == (2, 8, OUT_FEATURES)
    assert y.dtype == jnp.float32

    # Tight check against the same bf16-input / f32-accumulate math.
    x2d = x.reshape(-1, NMT_embed_size)
    y_bf16_ref = (jnp.dot(x2d.astype(jnp.bfloat16), w.T.astype(jnp.bfloat16),
                          preferred_element_type=jnp.float32) + b
                  ).reshape(2, 8, OUT_FEATURES)
    assert jnp.allclose(y, y_bf16_ref, atol=1e-2, rtol=1e-2)

    # Loose sanity check against the full-f32 reference (bf16 input rounding only).
    y_f32_ref = x @ w.T + b
    assert jnp.allclose(y, y_f32_ref, atol=1e-1, rtol=5e-2)

    print("KERNEL_OK")
</pallas_src>

<mosaic_0001>
module attributes {stable_mosaic.version = 11 : i64} {
  func.func @_linear_kernel(%arg0: i32, %arg1: memref<16x32xbf16, #tpu.memory_space<vmem>>, %arg2: memref<768x32xbf16, #tpu.memory_space<vmem>>, %arg3: memref<1x768xf32, #tpu.memory_space<vmem>>, %arg4: memref<16x768xf32, #tpu.memory_space<vmem>>) attributes {dimension_semantics = [#tpu.dimension_semantics<parallel>], iteration_bounds = array<i64: 1>, scalar_prefetch = 0 : i64, scratch_operands = 0 : i64, tpu.core_type = #tpu.core_type<tc>, window_params = [{transform_indices = @transform_0, window_bounds = array<i64: 16, 32>}, {pipeline_mode = #tpu.pipeline_mode<synchronous>, transform_indices = @transform_1, window_bounds = array<i64: 768, 32>}, {pipeline_mode = #tpu.pipeline_mode<synchronous>, transform_indices = @transform_2, window_bounds = array<i64: 1, 768>}, {transform_indices = @transform_3, window_bounds = array<i64: 16, 768>}]} {
    %c0 = arith.constant 0 : index
    %c0_0 = arith.constant 0 : index
    %0 = vector.load %arg1[%c0, %c0_0] : memref<16x32xbf16, #tpu.memory_space<vmem>>, vector<16x32xbf16>
    %c0_1 = arith.constant 0 : index
    %c0_2 = arith.constant 0 : index
    %1 = vector.load %arg2[%c0_1, %c0_2] : memref<768x32xbf16, #tpu.memory_space<vmem>>, vector<768x32xbf16>
    %cst = arith.constant dense<0.000000e+00> : vector<16x768xf32>
    %2 = tpu.matmul %0, %1, %cst {dimension_numbers = #tpu.dot_dimension_numbers<[1], [1], [0], [0], [0, 0, 1, 0], [], []>} : vector<16x32xbf16>, vector<768x32xbf16>, vector<16x768xf32> -> vector<16x768xf32>
    %c0_3 = arith.constant 0 : index
    %c0_4 = arith.constant 0 : index
    %3 = vector.load %arg3[%c0_3, %c0_4] : memref<1x768xf32, #tpu.memory_space<vmem>>, vector<1x768xf32>
    %4 = vector.broadcast %3 : vector<1x768xf32> to vector<16x768xf32>
    %5 = arith.addf %2, %4 : vector<16x768xf32>
    %c0_5 = arith.constant 0 : index
    %c0_6 = arith.constant 0 : index
    %6 = vector.load %arg4[%c0_5, %c0_6] : memref<16x768xf32, #tpu.memory_space<vmem>>, vector<16x768xf32>
    tpu.vector_store %arg4[%c0_5, %c0_6], %5 {strides = array<i32>} : memref<16x768xf32, #tpu.memory_space<vmem>>, vector<16x768xf32>,
    return
  }
  func.func @transform_0(%arg0: i32) -> (i32, i32) {
    %c0_i32 = arith.constant 0 : i32
    %c0_i32_0 = arith.constant 0 : i32
    return %arg0, %c0_i32 : i32, i32
  }
  func.func @transform_1(%arg0: i32) -> (i32, i32) {
    %c0_i32 = arith.constant 0 : i32
    %c0_i32_0 = arith.constant 0 : i32
    %c0_i32_1 = arith.constant 0 : i32
    return %c0_i32, %c0_i32_0 : i32, i32
  }
  func.func @transform_2(%arg0: i32) -> (i32, i32) {
    %c0_i32 = arith.constant 0 : i32
    %c0_i32_0 = arith.constant 0 : i32
    %c0_i32_1 = arith.constant 0 : i32
    return %c0_i32, %c0_i32_0 : i32, i32
  }
  func.func @transform_3(%arg0: i32) -> (i32, i32) {
    %c0_i32 = arith.constant 0 : i32
    %c0_i32_0 = arith.constant 0 : i32
    return %arg0, %c0_i32 : i32, i32
  }
}

</mosaic_0001>

<llo_original>
// kernel: tpu_custom_call.1
$region0: #{tpu_custom_call.1}
  #allocation0 [shape = 'u32[]', space=smem, size = 0x4, offset = 0x4, fixed_abs, tag = 'smem constant byte address 0x4 - core index']
  #allocation1 [shape = 'u32[144,128]{1,0:T(1,128)}', space=vmem, size = 0x12000, scoped, tag = 'internal scratch']
  %s0 = inlined_call_operand.vmem [shape: bf16[16,32], index: 0, kind: input, shape index: {}]
  %s1 = inlined_call_operand.vmem [shape: bf16[768,32], index: 1, kind: input, shape index: {}]
  %s2 = inlined_call_operand.vmem [shape: f32[1,768], index: 2, kind: input, shape index: {}]
  %s3 = inlined_call_operand.hbm [shape: f32[16,768], index: 3, kind: output, shape index: {}]
  %s4 = sld [smem:[#allocation0]]
  $region22: #{tpu_custom_call.1} parent=0
    _
  %s6 = ssub.s32 1, %s4
  %s7 = scalar_select 0, %s6, %s4
  $region1: #{tpu_custom_call.1} parent=0
    #allocation2 [shape = 'u8[49152]{0}', space=vmem, size = 0xc000, scoped, tag = 'output window, operand 0, single buffered']
    #allocation3 [shape = 's32[1]{0}', space=sflag, size = 0x4, scoped, tag = 'scoped memory for tpu_custom_call.1']
    %8 = vsyncpa [#allocation3], 0
    // Predicated region
    $region2: #{tpu_custom_call.1} parent=1 // pred_check
      _
    $region3: #{tpu_custom_call.1} parent=1 // pred_check_branch
      %10 = sbr.rel (0) target = $region5
    $region4: #{tpu_custom_call.1} parent=1 // pred_region
      _
    $region5: #{tpu_custom_call.1} parent=1 // pred_fallthru
      _
    // Predicated region
    $region6: #{tpu_custom_call.1} parent=1 // pred_check
      _
    $region7: #{tpu_custom_call.1} parent=1 // pred_check_branch
      %12 = sbr.rel (0) target = $region9
    $region8: #{tpu_custom_call.1} parent=1 // pred_region
      _
    $region9: #{tpu_custom_call.1} parent=1 // pred_fallthru
      _
    // Predicated region
    $region10: #{tpu_custom_call.1} parent=1 // pred_check
      _
    $region11: #{tpu_custom_call.1} parent=1 // pred_check_branch
      %14 = sbr.rel (0) target = $region13
    $region12: #{tpu_custom_call.1} parent=1 // pred_region
      _
    $region13: #{tpu_custom_call.1} parent=1 // pred_fallthru
      _
    %v16 = vld [vmem:[%s0] sm:$0xf]
    %v17 = vld [vmem:[%s0 + $0x4] sm:$0xf]
    %v18 = vld [vmem:[%s1] sm:$0xf]
    %v19 = vld [vmem:[%s1 + $0x4] sm:$0xf]
    %v20 = vld [vmem:[%s1 + $0x8] sm:$0xf]
    %v21 = vld [vmem:[%s1 + $0xc] sm:$0xf]
    %v22 = vld [vmem:[%s1 + $0x10] sm:$0xf]
    %v23 = vld [vmem:[%s1 + $0x14] sm:$0xf]
    %v24 = vld [vmem:[%s1 + $0x18] sm:$0xf]
    %v25 = vld [vmem:[%s1 + $0x1c] sm:$0xf]
    %v26 = vld [vmem:[%s1 + $0x20] sm:$0xf]
    %v27 = vld [vmem:[%s1 + $0x24] sm:$0xf]
    %v28 = vld [vmem:[%s1 + $0x28] sm:$0xf]
    %v29 = vld [vmem:[%s1 + $0x2c] sm:$0xf]
    %v30 = vld [vmem:[%s1 + $0x30] sm:$0xf]
    %v31 = vld [vmem:[%s1 + $0x34] sm:$0xf]
    %v32 = vld [vmem:[%s1 + $0x38] sm:$0xf]
    %v33 = vld [vmem:[%s1 + $0x3c] sm:$0xf]
    %v34 = vld [vmem:[%s1 + $0x40] sm:$0xf]
    %v35 = vld [vmem:[%s1 + $0x44] sm:$0xf]
    %v36 = vld [vmem:[%s1 + $0x48] sm:$0xf]
    %v37 = vld [vmem:[%s1 + $0x4c] sm:$0xf]
    %v38 = vld [vmem:[%s1 + $0x50] sm:$0xf]
    %v39 = vld [vmem:[%s1 + $0x54] sm:$0xf]
    %v40 = vld [vmem:[%s1 + $0x58] sm:$0xf]
    %v41 = vld [vmem:[%s1 + $0x5c] sm:$0xf]
    %v42 = vld [vmem:[%s1 + $0x60] sm:$0xf]
    %v43 = vld [vmem:[%s1 + $0x64] sm:$0xf]
    %v44 = vld [vmem:[%s1 + $0x68] sm:$0xf]
    %v45 = vld [vmem:[%s1 + $0x6c] sm:$0xf]
    %v46 = vld [vmem:[%s1 + $0x70] sm:$0xf]
    %v47 = vld [vmem:[%s1 + $0x74] sm:$0xf]
    %v48 = vld [vmem:[%s1 + $0x78] sm:$0xf]
    %v49 = vld [vmem:[%s1 + $0x7c] sm:$0xf]
    %v50 = vld [vmem:[%s1 + $0x80] sm:$0xf]
    %v51 = vld [vmem:[%s1 + $0x84] sm:$0xf]
    %v52 = vld [vmem:[%s1 + $0x88] sm:$0xf]
    %v53 = vld [vmem:[%s1 + $0x8c] sm:$0xf]
    %v54 = vld [vmem:[%s1 + $0x90] sm:$0xf]
    %v55 = vld [vmem:[%s1 + $0x94] sm:$0xf]
    %v56 = vld [vmem:[%s1 + $0x98] sm:$0xf]
    %v57 = vld [vmem:[%s1 + $0x9c] sm:$0xf]
    %v58 = vld [vmem:[%s1 + $0xa0] sm:$0xf]
    %v59 = vld [vmem:[%s1 + $0xa4] sm:$0xf]
    %v60 = vld [vmem:[%s1 + $0xa8] sm:$0xf]
    %v61 = vld [vmem:[%s1 + $0xac] sm:$0xf]
    %v62 = vld [vmem:[%s1 + $0xb0] sm:$0xf]
    %v63 = vld [vmem:[%s1 + $0xb4] sm:$0xf]
    %v64 = vld [vmem:[%s1 + $0xb8] sm:$0xf]
    %v65 = vld [vmem:[%s1 + $0xbc] sm:$0xf]
    %v66 = vld [vmem:[%s1 + $0xc0] sm:$0xf]
    %v67 = vld [vmem:[%s1 + $0xc4] sm:$0xf]
    %v68 = vld [vmem:[%s1 + $0xc8] sm:$0xf]
    %v69 = vld [vmem:[%s1 + $0xcc] sm:$0xf]
    %v70 = vld [vmem:[%s1 + $0xd0] sm:$0xf]
    %v71 = vld [vmem:[%s1 + $0xd4] sm:$0xf]
    %v72 = vld [vmem:[%s1 + $0xd8] sm:$0xf]
    %v73 = vld [vmem:[%s1 + $0xdc] sm:$0xf]
    %v74 = vld [vmem:[%s1 + $0xe0] sm:$0xf]
    %v75 = vld [vmem:[%s1 + $0xe4] sm:$0xf]
    %v76 = vld [vmem:[%s1 + $0xe8] sm:$0xf]
    %v77 = vld [vmem:[%s1 + $0xec] sm:$0xf]
    %v78 = vld [vmem:[%s1 + $0xf0] sm:$0xf]
    %v79 = vld [vmem:[%s1 + $0xf4] sm:$0xf]
    %v80 = vld [vmem:[%s1 + $0xf8] sm:$0xf]
    %v81 = vld [vmem:[%s1 + $0xfc] sm:$0xf]
    %v82 = vld [vmem:[%s1 + $0x100] sm:$0xf]
    %v83 = vld [vmem:[%s1 + $0x104] sm:$0xf]
    %v84 = vld [vmem:[%s1 + $0x108] sm:$0xf]
    %v85 = vld [vmem:[%s1 + $0x10c] sm:$0xf]
    %v86 = vld [vmem:[%s1 + $0x110] sm:$0xf]
    %v87 = vld [vmem:[%s1 + $0x114] sm:$0xf]
    %v88 = vld [vmem:[%s1 + $0x118] sm:$0xf]
    %v89 = vld [vmem:[%s1 + $0x11c] sm:$0xf]
    %v90 = vld [vmem:[%s1 + $0x120] sm:$0xf]
    %v91 = vld [vmem:[%s1 + $0x124] sm:$0xf]
    %v92 = vld [vmem:[%s1 + $0x128] sm:$0xf]
    %v93 = vld [vmem:[%s1 + $0x12c] sm:$0xf]
    %v94 = vld [vmem:[%s1 + $0x130] sm:$0xf]
    %v95 = vld [vmem:[%s1 + $0x134] sm:$0xf]
    %v96 = vld [vmem:[%s1 + $0x138] sm:$0xf]
    %v97 = vld [vmem:[%s1 + $0x13c] sm:$0xf]
    %v98 = vld [vmem:[%s1 + $0x140] sm:$0xf]
    %v99 = vld [vmem:[%s1 + $0x144] sm:$0xf]
    %v100 = vld [vmem:[%s1 + $0x148] sm:$0xf]
    %v101 = vld [vmem:[%s1 + $0x14c] sm:$0xf]
    %v102 = vld [vmem:[%s1 + $0x150] sm:$0xf]
    %v103 = vld [vmem:[%s1 + $0x154] sm:$0xf]
    %v104 = vld [vmem:[%s1 + $0x158] sm:$0xf]
    %v105 = vld [vmem:[%s1 + $0x15c] sm:$0xf]
    %v106 = vld [vmem:[%s1 + $0x160] sm:$0xf]
    %v107 = vld [vmem:[%s1 + $0x164] sm:$0xf]
    %v108 = vld [vmem:[%s1 + $0x168] sm:$0xf]
    %v109 = vld [vmem:[%s1 + $0x16c] sm:$0xf]
    %v110 = vld [vmem:[%s1 + $0x170] sm:$0xf]
    %v111 = vld [vmem:[%s1 + $0x174] sm:$0xf]
    %v112 = vld [vmem:[%s1 + $0x178] sm:$0xf]
    %v113 = vld [vmem:[%s1 + $0x17c] sm:$0xf]
    %v114 = vld [vmem:[%s2] sm:$0x3f]
    %v116 = vlaneseq
    %v117 = vshrl.u32 %v116, 7
    %v118 = vsub.s32 0, %v117
    %v119 = vrot.slane %v114, %v118
    %v120 = vlaneseq
    %v121 = vshrl.u32 %v120, 7
    %v122 = vsub.s32 1, %v121
    %v123 = vrot.slane %v114, %v122
    %v124 = vlaneseq
    %v125 = vshrl.u32 %v124, 7
    %v126 = vsub.s32 2, %v125
    %v127 = vrot.slane %v114, %v126
    %v128 = vlaneseq
    %v129 = vshrl.u32 %v128, 7
    %v130 = vsub.s32 3, %v129
    %v131 = vrot.slane %v114, %v130
    %v132 = vlaneseq
    %v133 = vshrl.u32 %v132, 7
    %v134 = vsub.s32 4, %v133
    %v135 = vrot.slane %v114, %v134
    %v136 = vlaneseq
    %v137 = vshrl.u32 %v136, 7
    %v138 = vsub.s32 5, %v137
    %v139 = vrot.slane %v114, %v138
    %v148 = vunpack.c.l.b16 %v16
    %v149 = vunpack.c.l.b16 %v17
    %v150 = vpack.c.b16 %v149, %v148
    %v247 = vunpack.c.l.b16 %v18
    %v248 = vunpack.c.l.b16 %v19
    %v249 = vunpack.c.l.b16 %v20
    %v250 = vunpack.c.l.b16 %v21
    %v251 = vunpack.c.l.b16 %v22
    %v252 = vunpack.c.l.b16 %v23
    %v253 = vunpack.c.l.b16 %v24
    %v254 = vunpack.c.l.b16 %v25
    %v255 = vunpack.c.l.b16 %v26
    %v256 = vunpack.c.l.b16 %v27
    %v257 = vunpack.c.l.b16 %v28
    %v258 = vunpack.c.l.b16 %v29
    %v259 = vunpack.c.l.b16 %v30
    %v260 = vunpack.c.l.b16 %v31
    %v261 = vunpack.c.l.b16 %v32
    %v262 = vunpack.c.l.b16 %v33
    %v263 = vunpack.c.l.b16 %v34
    %v264 = vunpack.c.l.b16 %v35
    %v265 = vunpack.c.l.b16 %v36
    %v266 = vunpack.c.l.b16 %v37
    %v267 = vunpack.c.l.b16 %v38
    %v268 = vunpack.c.l.b16 %v39
    %v269 = vunpack.c.l.b16 %v40
    %v270 = vunpack.c.l.b16 %v41
    %v271 = vunpack.c.l.b16 %v42
    %v272 = vunpack.c.l.b16 %v43
    %v273 = vunpack.c.l.b16 %v44
    %v274 = vunpack.c.l.b16 %v45
    %v275 = vunpack.c.l.b16 %v46
    %v276 = vunpack.c.l.b16 %v47
    %v277 = vunpack.c.l.b16 %v48
    %v278 = vunpack.c.l.b16 %v49
    %v279 = vunpack.c.l.b16 %v50
    %v280 = vunpack.c.l.b16 %v51
    %v281 = vunpack.c.l.b16 %v52
    %v282 = vunpack.c.l.b16 %v53
    %v283 = vunpack.c.l.b16 %v54
    %v284 = vunpack.c.l.b16 %v55
    %v285 = vunpack.c.l.b16 %v56
    %v286 = vunpack.c.l.b16 %v57
    %v287 = vunpack.c.l.b16 %v58
    %v288 = vunpack.c.l.b16 %v59
    %v289 = vunpack.c.l.b16 %v60
    %v290 = vunpack.c.l.b16 %v61
    %v291 = vunpack.c.l.b16 %v62
    %v292 = vunpack.c.l.b16 %v63
    %v293 = vunpack.c.l.b16 %v64
    %v294 = vunpack.c.l.b16 %v65
    %v295 = vunpack.c.l.b16 %v66
    %v296 = vunpack.c.l.b16 %v67
    %v297 = vunpack.c.l.b16 %v68
    %v298 = vunpack.c.l.b16 %v69
    %v299 = vunpack.c.l.b16 %v70
    %v300 = vunpack.c.l.b16 %v71
    %v301 = vunpack.c.l.b16 %v72
    %v302 = vunpack.c.l.b16 %v73
    %v303 = vunpack.c.l.b16 %v74
    %v304 = vunpack.c.l.b16 %v75
    %v305 = vunpack.c.l.b16 %v76
    %v306 = vunpack.c.l.b16 %v77
    %v307 = vunpack.c.l.b16 %v78
    %v308 = vunpack.c.l.b16 %v79
    %v309 = vunpack.c.l.b16 %v80
    %v310 = vunpack.c.l.b16 %v81
    %v311 = vunpack.c.l.b16 %v82
    %v312 = vunpack.c.l.b16 %v83
    %v313 = vunpack.c.l.b16 %v84
    %v314 = vunpack.c.l.b16 %v85
    %v315 = vunpack.c.l.b16 %v86
    %v316 = vunpack.c.l.b16 %v87
    %v317 = vunpack.c.l.b16 %v88
    %v318 = vunpack.c.l.b16 %v89
    %v319 = vunpack.c.l.b16 %v90
    %v320 = vunpack.c.l.b16 %v91
    %v321 = vunpack.c.l.b16 %v92
    %v322 = vunpack.c.l.b16 %v93
    %v323 = vunpack.c.l.b16 %v94
    %v324 = vunpack.c.l.b16 %v95
    %v325 = vunpack.c.l.b16 %v96
    %v326 = vunpack.c.l.b16 %v97
    %v327 = vunpack.c.l.b16 %v98
    %v328 = vunpack.c.l.b16 %v99
    %v329 = vunpack.c.l.b16 %v100
    %v330 = vunpack.c.l.b16 %v101
    %v331 = vunpack.c.l.b16 %v102
    %v332 = vunpack.c.l.b16 %v103
    %v333 = vunpack.c.l.b16 %v104
    %v334 = vunpack.c.l.b16 %v105
    %v335 = vunpack.c.l.b16 %v106
    %v336 = vunpack.c.l.b16 %v107
    %v337 = vunpack.c.l.b16 %v108
    %v338 = vunpack.c.l.b16 %v109
    %v339 = vunpack.c.l.b16 %v110
    %v340 = vunpack.c.l.b16 %v111
    %v341 = vunpack.c.l.b16 %v112
    %v342 = vunpack.c.l.b16 %v113
    %v343 = vpack.c.b16 %v248, %v247
    %v344 = vpack.c.b16 %v250, %v249
    %v345 = vpack.c.b16 %v252, %v251
    %v346 = vpack.c.b16 %v254, %v253
    %v347 = vpack.c.b16 %v256, %v255
    %v348 = vpack.c.b16 %v258, %v257
    %v349 = vpack.c.b16 %v260, %v259
    %v350 = vpack.c.b16 %v262, %v261
    %v351 = vpack.c.b16 %v264, %v263
    %v352 = vpack.c.b16 %v266, %v265
    %v353 = vpack.c.b16 %v268, %v267
    %v354 = vpack.c.b16 %v270, %v269
    %v355 = vpack.c.b16 %v272, %v271
    %v356 = vpack.c.b16 %v274, %v273
    %v357 = vpack.c.b16 %v276, %v275
    %v358 = vpack.c.b16 %v278, %v277
    %v359 = vpack.c.b16 %v280, %v279
    %v360 = vpack.c.b16 %v282, %v281
    %v361 = vpack.c.b16 %v284, %v283
    %v362 = vpack.c.b16 %v286, %v285
    %v363 = vpack.c.b16 %v288, %v287
    %v364 = vpack.c.b16 %v290, %v289
    %v365 = vpack.c.b16 %v292, %v291
    %v366 = vpack.c.b16 %v294, %v293
    %v367 = vpack.c.b16 %v296, %v295
    %v368 = vpack.c.b16 %v298, %v297
    %v369 = vpack.c.b16 %v300, %v299
    %v370 = vpack.c.b16 %v302, %v301
    %v371 = vpack.c.b16 %v304, %v303
    %v372 = vpack.c.b16 %v306, %v305
    %v373 = vpack.c.b16 %v308, %v307
    %v374 = vpack.c.b16 %v310, %v309
    %v375 = vpack.c.b16 %v312, %v311
    %v376 = vpack.c.b16 %v314, %v313
    %v377 = vpack.c.b16 %v316, %v315
    %v378 = vpack.c.b16 %v318, %v317
    %v379 = vpack.c.b16 %v320, %v319
    %v380 = vpack.c.b16 %v322, %v321
    %v381 = vpack.c.b16 %v324, %v323
    %v382 = vpack.c.b16 %v326, %v325
    %v383 = vpack.c.b16 %v328, %v327
    %v384 = vpack.c.b16 %v330, %v329
    %v385 = vpack.c.b16 %v332, %v331
    %v386 = vpack.c.b16 %v334, %v333
    %v387 = vpack.c.b16 %v336, %v335
    %v388 = vpack.c.b16 %v338, %v337
    %v389 = vpack.c.b16 %v340, %v339
    %v390 = vpack.c.b16 %v342, %v341
    %vm391 = vcmask 261120
    %v393 = vsel %vm391, %v150, 0
    %v396 = vsel %vm391, %v343, 0
    %v399 = vsel %vm391, %v344, 0
    %v402 = vsel %vm391, %v345, 0
    %v405 = vsel %vm391, %v346, 0
    %v408 = vsel %vm391, %v347, 0
    %v411 = vsel %vm391, %v348, 0
    %v414 = vsel %vm391, %v349, 0
    %v417 = vsel %vm391, %v350, 0
    %v420 = vsel %vm391, %v351, 0
    %v423 = vsel %vm391, %v352, 0
    %v426 = vsel %vm391, %v353, 0
    %v429 = vsel %vm391, %v354, 0
    %v432 = vsel %vm391, %v355, 0
    %v435 = vsel %vm391, %v356, 0
    %v438 = vsel %vm391, %v357, 0
    %v441 = vsel %vm391, %v358, 0
    %v444 = vsel %vm391, %v359, 0
    %v447 = vsel %vm391, %v360, 0
    %v450 = vsel %vm391, %v361, 0
    %v453 = vsel %vm391, %v362, 0
    %v456 = vsel %vm391, %v363, 0
    %v459 = vsel %vm391, %v364, 0
    %v462 = vsel %vm391, %v365, 0
    %v465 = vsel %vm391, %v366, 0
    %v468 = vsel %vm391, %v367, 0
    %v471 = vsel %vm391, %v368, 0
    %v474 = vsel %vm391, %v369, 0
    %v477 = vsel %vm391, %v370, 0
    %v480 = vsel %vm391, %v371, 0
    %v483 = vsel %vm391, %v372, 0
    %v486 = vsel %vm391, %v373, 0
    %v489 = vsel %vm391, %v374, 0
    %v492 = vsel %vm391, %v375, 0
    %v495 = vsel %vm391, %v376, 0
    %v498 = vsel %vm391, %v377, 0
    %v501 = vsel %vm391, %v378, 0
    %v504 = vsel %vm391, %v379, 0
    %v507 = vsel %vm391, %v380, 0
    %v510 = vsel %vm391, %v381, 0
    %v513 = vsel %vm391, %v382, 0
    %v516 = vsel %vm391, %v383, 0
    %v519 = vsel %vm391, %v384, 0
    %v522 = vsel %vm391, %v385, 0
    %v525 = vsel %vm391, %v386, 0
    %v528 = vsel %vm391, %v387, 0
    %v531 = vsel %vm391, %v388, 0
    %v534 = vsel %vm391, %v389, 0
    %v537 = vsel %vm391, %v390, 0
    %539 = vmatprep.subr.bf16.mxu0 0
    %540 = vmatpush1.bf16.xpose.msra.mxu0 %v396
    %541 = vmatprep.subr.bf16.mxu0 0
    %542 = vmatpush1.bf16.xpose.msra.mxu0 %v399
    %543 = vmatprep.subr.bf16.mxu0 0
    %544 = vmatpush1.bf16.xpose.msra.mxu0 %v402
    %545 = vmatprep.subr.bf16.mxu0 0
    %546 = vmatpush1.bf16.xpose.msra.mxu0 %v405
    %547 = vmatprep.subr.bf16.mxu0 0
    %548 = vmatpush1.bf16.xpose.msra.mxu0 %v408
    %549 = vmatprep.subr.bf16.mxu0 0
    %550 = vmatpush1.bf16.xpose.msra.mxu0 %v411
    %551 = vmatprep.subr.bf16.mxu0 0
    %552 = vmatpush1.bf16.xpose.msra.mxu0 %v414
    %553 = vmatprep.subr.bf16.mxu0 0
    %554 = vmatpush1.bf16.xpose.msra.mxu0 %v417
    %555 = vmatprep.subr.bf16.mxu0 0
    %556 = vmatpush1.bf16.xpose.msra.mxu0 %v420
    %557 = vmatprep.subr.bf16.mxu0 0
    %558 = vmatpush1.bf16.xpose.msra.mxu0 %v423
    %559 = vmatprep.subr.bf16.mxu0 0
    %560 = vmatpush1.bf16.xpose.msra.mxu0 %v426
    %561 = vmatprep.subr.bf16.mxu0 0
    %562 = vmatpush1.bf16.xpose.msra.mxu0 %v429
    %563 = vmatprep.subr.bf16.mxu0 0
    %564 = vmatpush1.bf16.xpose.msra.mxu0 %v432
    %565 = vmatprep.subr.bf16.mxu0 0
    %566 = vmatpush1.bf16.xpose.msra.mxu0 %v435
    %567 = vmatprep.subr.bf16.mxu0 0
    %568 = vmatpush1.bf16.xpose.msra.mxu0 %v438
    %569 = vmatprep.subr.bf16.mxu0 0
    %570 = vmatpush1.bf16.xpose.msra.mxu0 %v441
    %571 = vmatprep.mubr.bf16.mxu0 0
    %572 = vmatmul.mubr.bf16.gmra.mrb[0].mxu0 %v393
    %v573 = vpop.f32.mrb[0].mxu0
    %v574 = vadd.f32 %v119, %v573
    %v575 = vpop.f32.mrb[0].mxu0
    %v576 = vadd.f32 %v123, %v575
    %v577 = vpop.f32.mrb[0].mxu0
    %v578 = vadd.f32 %v119, %v577
    %v579 = vpop.f32.mrb[0].mxu0
    %v580 = vadd.f32 %v123, %v579
    %581 = vdwg.mxu0
    %582 = vmatprep.subr.bf16.mxu0 0
    %583 = vmatpush1.bf16.xpose.msra.mxu0 %v444
    %584 = vmatprep.subr.bf16.mxu0 0
    %585 = vmatpush1.bf16.xpose.msra.mxu0 %v447
    %586 = vmatprep.subr.bf16.mxu0 0
    %587 = vmatpush1.bf16.xpose.msra.mxu0 %v450
    %588 = vmatprep.subr.bf16.mxu0 0
    %589 = vmatpush1.bf16.xpose.msra.mxu0 %v453
    %590 = vmatprep.subr.bf16.mxu0 0
    %591 = vmatpush1.bf16.xpose.msra.mxu0 %v456
    %592 = vmatprep.subr.bf16.mxu0 0
    %593 = vmatpush1.bf16.xpose.msra.mxu0 %v459
    %594 = vmatprep.subr.bf16.mxu0 0
    %595 = vmatpush1.bf16.xpose.msra.mxu0 %v462
    %596 = vmatprep.subr.bf16.mxu0 0
    %597 = vmatpush1.bf16.xpose.msra.mxu0 %v465
    %598 = vmatprep.subr.bf16.mxu0 0
    %599 = vmatpush1.bf16.xpose.msra.mxu0 %v468
    %600 = vmatprep.subr.bf16.mxu0 0
    %601 = vmatpush1.bf16.xpose.msra.mxu0 %v471
    %602 = vmatprep.subr.bf16.mxu0 0
    %603 = vmatpush1.bf16.xpose.msra.mxu0 %v474
    %604 = vmatprep.subr.bf16.mxu0 0
    %605 = vmatpush1.bf16.xpose.msra.mxu0 %v477
    %606 = vmatprep.subr.bf16.mxu0 0
    %607 = vmatpush1.bf16.xpose.msra.mxu0 %v480
    %608 = vmatprep.subr.bf16.mxu0 0
    %609 = vmatpush1.bf16.xpose.msra.mxu0 %v483
    %610 = vmatprep.subr.bf16.mxu0 0
    %611 = vmatpush1.bf16.xpose.msra.mxu0 %v486
    %612 = vmatprep.subr.bf16.mxu0 0
    %613 = vmatpush1.bf16.xpose.msra.mxu0 %v489
    %614 = vmatprep.mubr.bf16.mxu0 0
    %615 = vmatmul.mubr.bf16.gmra.mrb[0].mxu0 %v393
    %v616 = vpop.f32.mrb[0].mxu0
    %v617 = vadd.f32 %v127, %v616
    %v618 = vpop.f32.mrb[0].mxu0
    %v619 = vadd.f32 %v131, %v618
    %v620 = vpop.f32.mrb[0].mxu0
    %v621 = vadd.f32 %v127, %v620
    %v622 = vpop.f32.mrb[0].mxu0
    %v623 = vadd.f32 %v131, %v622
    %624 = vdwg.mxu0
    %625 = vmatprep.subr.bf16.mxu0 0
    %626 = vmatpush1.bf16.xpose.msra.mxu0 %v492
    %627 = vmatprep.subr.bf16.mxu0 0
    %628 = vmatpush1.bf16.xpose.msra.mxu0 %v495
    %629 = vmatprep.subr.bf16.mxu0 0
    %630 = vmatpush1.bf16.xpose.msra.mxu0 %v498
    %631 = vmatprep.subr.bf16.mxu0 0
    %632 = vmatpush1.bf16.xpose.msra.mxu0 %v501
    %633 = vmatprep.subr.bf16.mxu0 0
    %634 = vmatpush1.bf16.xpose.msra.mxu0 %v504
    %635 = vmatprep.subr.bf16.mxu0 0
    %636 = vmatpush1.bf16.xpose.msra.mxu0 %v507
    %637 = vmatprep.subr.bf16.mxu0 0
    %638 = vmatpush1.bf16.xpose.msra.mxu0 %v510
    %639 = vmatprep.subr.bf16.mxu0 0
    %640 = vmatpush1.bf16.xpose.msra.mxu0 %v513
    %641 = vmatprep.subr.bf16.mxu0 0
    %642 = vmatpush1.bf16.xpose.msra.mxu0 %v516
    %643 = vmatprep.subr.bf16.mxu0 0
    %644 = vmatpush1.bf16.xpose.msra.mxu0 %v519
    %645 = vmatprep.subr.bf16.mxu0 0
    %646 = vmatpush1.bf16.xpose.msra.mxu0 %v522
    %647 = vmatprep.subr.bf16.mxu0 0
    %648 = vmatpush1.bf16.xpose.msra.mxu0 %v525
    %649 = vmatprep.subr.bf16.mxu0 0
    %650 = vmatpush1.bf16.xpose.msra.mxu0 %v528
    %651 = vmatprep.subr.bf16.mxu0 0
    %652 = vmatpush1.bf16.xpose.msra.mxu0 %v531
    %653 = vmatprep.subr.bf16.mxu0 0
    %654 = vmatpush1.bf16.xpose.msra.mxu0 %v534
    %655 = vmatprep.subr.bf16.mxu0 0
    %656 = vmatpush1.bf16.xpose.msra.mxu0 %v537
    %657 = vmatprep.mubr.bf16.mxu0 0
    %658 = vmatmul.mubr.bf16.gmra.mrb[0].mxu0 %v393
    %v659 = vpop.f32.mrb[0].mxu0
    %v660 = vadd.f32 %v135, %v659
    %v661 = vpop.f32.mrb[0].mxu0
    %v662 = vadd.f32 %v139, %v661
    %v663 = vpop.f32.mrb[0].mxu0
    %v664 = vadd.f32 %v135, %v663
    %v665 = vpop.f32.mrb[0].mxu0
    %v666 = vadd.f32 %v139, %v665
    %667 = vdwg.mxu0
    %668 = vst [vmem:[#allocation2] sm:$0xff] %v574
    %669 = vst [vmem:[#allocation2 + $0x8] sm:$0xff] %v576
    %670 = vst [vmem:[#allocation2 + $0x10] sm:$0xff] %v617
    %671 = vst [vmem:[#allocation2 + $0x18] sm:$0xff] %v619
    %672 = vst [vmem:[#allocation2 + $0x20] sm:$0xff] %v660
    %673 = vst [vmem:[#allocation2 + $0x28] sm:$0xff] %v662
    %674 = vst [vmem:[#allocation2 + $0x30] sm:$0xff] %v578
    %675 = vst [vmem:[#allocation2 + $0x38] sm:$0xff] %v580
    %676 = vst [vmem:[#allocation2 + $0x40] sm:$0xff] %v621
    %677 = vst [vmem:[#allocation2 + $0x48] sm:$0xff] %v623
    %678 = vst [vmem:[#allocation2 + $0x50] sm:$0xff] %v664
    %679 = vst [vmem:[#allocation2 + $0x58] sm:$0xff] %v666
    // Predicated region
    $region14: #{tpu_custom_call.1} parent=1 // pred_check
      _
    $region15: #{tpu_custom_call.1} parent=1 // pred_check_branch
      %681 = sbr.rel (0) target = $region17
    $region16: #{tpu_custom_call.1} parent=1 // pred_region
      %s683 = ssub.s32 1536, 1536
      %684 = vsyncadd [#allocation3], %s683
      %s685 = sshll.u32 [#allocation2], 4
      %s686 = int_to_ptr.vmem [resolvable:$true] %s685
      %691 = dma.vmem_to_hbm [thread:$0]  %s686, 1536, %s3, [#allocation3], 768, 768, 48
    $region17: #{tpu_custom_call.1} parent=1 // pred_fallthru
      _
    // Predicated region
    $region18: #{tpu_custom_call.1} parent=1 // pred_check
      _
    $region19: #{tpu_custom_call.1} parent=1 // pred_check_branch
      %693 = sbr.rel (0) target = $region21
    $region20: #{tpu_custom_call.1} parent=1 // pred_region
      %694 = dma.done [#allocation3], 1536
    $region21: #{tpu_custom_call.1} parent=1 // pred_fallthru
      _
    %695 = vsyncpa [#allocation3], 1

</llo_original>
